<compile_context>
chip_gen: v5e
topology: v5e:2x2
jax: 0.10.0
libtpu: 0.0.40
codegen_flags: <defaults>
</compile_context>

<pallas_src>
import functools

import jax
import jax.numpy as jnp
from jax.experimental import pallas as pl
from jax.experimental.pallas import tpu as pltpu


def _lm_kernel(beta_ref, tf_ref, lm_ref, out_ref, *, norm: bool):
    """features = tf + beta*lm, optionally L2-normalized along the last dim."""
    beta = beta_ref[0, 0]                                   # SMEM scalar
    feats = tf_ref[...] + beta * lm_ref[...]                # VPU elementwise
    if norm:
        # Matches torch `x / x.norm(dim=-1, keepdim=True)` (no eps clamp, so a
        # zero-norm row yields inf/nan exactly like the PyTorch reference).
        sq_sum = jnp.sum(feats * feats, axis=-1, keepdims=True)   # XLU reduce
        feats = feats * jax.lax.rsqrt(sq_sum)                     # EUP rsqrt
    out_ref[...] = feats.astype(out_ref.dtype)


# Below this total footprint (2 inputs + 1 output) Pallas dispatch overhead
# dominates; use a plain fused jnp expression instead.
_XLA_FAST_PATH_BYTES = 64 * 1024
# Below this footprint a single grid-less VMEM block is used (no pipeline).
_SINGLE_BLOCK_BYTES = 2 * 1024 * 1024


def _vmem_block_budget_bytes() -> int:
    """Per-generation budget for the live block buffers of the tiled path
    (2 inputs + 1 output, double-buffered = 6 blocks)."""
    try:
        kind = jax.devices()[0].device_kind.lower()
    except Exception:  # pragma: no cover - defensive fallback
        kind = ""
    if "v7" in kind:
        return 24 * 1024 * 1024     # bigger tiles: per-step overhead matters more at 3.2 TB/s
    if "v6" in kind:
        return 16 * 1024 * 1024
    return 12 * 1024 * 1024         # v5e / unknown: conservative


def lm_forward(text_features: jax.Array,
               learning_matrix: jax.Array,
               beta: float = 0.8,
               norm: bool = True,
               row_tile: int | None = None,
               force_pallas: bool = False) -> jax.Array:
    """Pallas equivalent of LM.forward(norm=norm)."""
    assert text_features.shape == learning_matrix.shape
    assert text_features.ndim == 2
    n, d = text_features.shape
    itemsize = jnp.dtype(text_features.dtype).itemsize
    total_bytes = 3 * n * d * itemsize

    # ---- Tiny case (N = a handful of prompts): skip Pallas entirely. ----
    if (not force_pallas) and row_tile is None and total_bytes <= _XLA_FAST_PATH_BYTES:
        feats = text_features + beta * learning_matrix
        if norm:
            feats = feats * jax.lax.rsqrt(
                jnp.sum(feats * feats, axis=-1, keepdims=True))
        return feats.astype(text_features.dtype)

    beta_arr = jnp.full((1, 1), beta, dtype=jnp.float32)    # runtime scalar (SMEM)
    kernel = functools.partial(_lm_kernel, norm=bool(norm))

    # ---- Small / mid: single VMEM block, no grid, no pipeline. ----
    if row_tile is None and total_bytes <= _SINGLE_BLOCK_BYTES:
        return pl.pallas_call(
            kernel,
            out_shape=jax.ShapeDtypeStruct((n, d), text_features.dtype),
            in_specs=[
                pl.BlockSpec(memory_space=pltpu.MemorySpace.SMEM),   # beta
                pl.BlockSpec(memory_space=pltpu.MemorySpace.VMEM),   # text_features
                pl.BlockSpec(memory_space=pltpu.MemorySpace.VMEM),   # learning_matrix
            ],
            out_specs=pl.BlockSpec(memory_space=pltpu.MemorySpace.VMEM),
        )(beta_arr, text_features, learning_matrix)

    # ---- Large N: row-tiled grid, biggest tile that fits the budget. ----
    budget = _vmem_block_budget_bytes()
    if row_tile is None:
        # 2 inputs + 1 output, double-buffered = 6 buffers of (tn, d).
        row_tile = budget // (6 * d * itemsize)
    tn = max(8, (int(row_tile) // 8) * 8)                    # multiple of 8 rows
    tn = min(tn, ((n + 7) // 8) * 8)                         # don't exceed (padded) n
    grid = (pl.cdiv(n, tn),)

    # Explicit VMEM limit: block buffers + headroom for Pallas internal
    # scratch, so we never depend on the per-generation scoped default.
    vmem_limit = int(6 * tn * d * itemsize + (8 << 20))

    return pl.pallas_call(
        kernel,
        out_shape=jax.ShapeDtypeStruct((n, d), text_features.dtype),
        grid=grid,
        in_specs=[
            pl.BlockSpec(memory_space=pltpu.MemorySpace.SMEM),       # beta (untiled)
            pl.BlockSpec((tn, d), lambda i: (i, 0)),                 # text_features
            pl.BlockSpec((tn, d), lambda i: (i, 0)),                 # learning_matrix
        ],
        out_specs=pl.BlockSpec((tn, d), lambda i: (i, 0)),
        compiler_params=pltpu.CompilerParams(
            dimension_semantics=("parallel",),                       # rows independent
            vmem_limit_bytes=vmem_limit),
    )(beta_arr, text_features, learning_matrix)


def _reference(text_features, learning_matrix, beta=0.8, norm=True):
    feats = text_features + beta * learning_matrix
    if norm:
        feats = feats / jnp.linalg.norm(feats, axis=-1, keepdims=True)
    return feats


if __name__ == "__main__":
    key = jax.random.PRNGKey(0)
    k_tf, k_lm, k_tf2, k_lm2 = jax.random.split(key, 4)

    beta = 0.8

    # --- Module-sized case: a couple of encoded prompts, D=512 (ViT-B/32). ---
    N, D = 2, 512
    text_features = jax.random.normal(k_tf, (N, D), dtype=jnp.float32)
    # In the module the learning matrix is initialized to zeros; use a small
    # nonzero perturbation so the beta*lm term is actually exercised.
    learning_matrix = 0.1 * jax.random.normal(k_lm, (N, D), dtype=jnp.float32)

    ref = _reference(text_features, learning_matrix, beta=beta, norm=True)

    # Default path for tiny inputs (fused XLA, no Pallas dispatch).
    out_fast = jax.block_until_ready(
        lm_forward(text_features, learning_matrix, beta=beta, norm=True))
    assert out_fast.shape == (N, D)
    assert jnp.allclose(out_fast, ref, atol=1e-5, rtol=1e-5), "fast path mismatch"

    # Same inputs through the single-block Pallas kernel.
    out_pl = jax.block_until_ready(
        lm_forward(text_features, learning_matrix, beta=beta, norm=True,
                   force_pallas=True))
    assert jnp.allclose(out_pl, ref, atol=1e-5, rtol=1e-5), "norm=True mismatch"

    out_nn = jax.block_until_ready(
        lm_forward(text_features, learning_matrix, beta=beta, norm=False,
                   force_pallas=True))
    ref_nn = _reference(text_features, learning_matrix, beta=beta, norm=False)
    assert jnp.allclose(out_nn, ref_nn, atol=1e-6, rtol=1e-6), "norm=False mismatch"

    # --- Batched case: exercise the row-tiled ("parallel") grid path. ---
    NB = 64
    tf_b = jax.random.normal(k_tf2, (NB, D), dtype=jnp.float32)
    lm_b = 0.1 * jax.random.normal(k_lm2, (NB, D), dtype=jnp.float32)
    out_b = jax.block_until_ready(
        lm_forward(tf_b, lm_b, beta=beta, norm=True, row_tile=16))
    ref_b = _reference(tf_b, lm_b, beta=beta, norm=True)
    assert jnp.allclose(out_b, ref_b, atol=1e-5, rtol=1e-5), "tiled path mismatch"

    print("KERNEL_OK")
</pallas_src>

<mosaic_0001>
module attributes {stable_mosaic.version = 11 : i64} {
  func.func @_lm_kernel(%arg0: memref<1x1xf32, #tpu.memory_space<smem>>, %arg1: memref<2x512xf32, #tpu.memory_space<vmem>>, %arg2: memref<2x512xf32, #tpu.memory_space<vmem>>, %arg3: memref<2x512xf32, #tpu.memory_space<vmem>>) attributes {dimension_semantics = [], scalar_prefetch = 0 : i64, scratch_operands = 0 : i64, tpu.core_type = #tpu.core_type<tc>} {
    %c0 = arith.constant 0 : index
    %c0_0 = arith.constant 0 : index
    %0 = memref.load %arg0[%c0, %c0_0] : memref<1x1xf32, #tpu.memory_space<smem>>
    %c0_1 = arith.constant 0 : index
    %c0_2 = arith.constant 0 : index
    %1 = vector.load %arg1[%c0_1, %c0_2] : memref<2x512xf32, #tpu.memory_space<vmem>>, vector<2x512xf32>
    %c0_3 = arith.constant 0 : index
    %c0_4 = arith.constant 0 : index
    %2 = vector.load %arg2[%c0_3, %c0_4] : memref<2x512xf32, #tpu.memory_space<vmem>>, vector<2x512xf32>
    %3 = vector.broadcast %0 : f32 to vector<2x512xf32>
    %4 = arith.mulf %3, %2 : vector<2x512xf32>
    %5 = arith.addf %1, %4 : vector<2x512xf32>
    %6 = arith.mulf %5, %5 : vector<2x512xf32>
    %cst = arith.constant dense<0.000000e+00> : vector<2xf32>
    %7 = vector.multi_reduction <add>, %6, %cst [1] : vector<2x512xf32> to vector<2xf32>
    %8 = vector.shape_cast %7 : vector<2xf32> to vector<2x1xf32>
    %9 = math.rsqrt %8 : vector<2x1xf32>
    %10 = vector.broadcast %9 : vector<2x1xf32> to vector<2x512xf32>
    %11 = arith.mulf %5, %10 : vector<2x512xf32>
    %c0_5 = arith.constant 0 : index
    %c0_6 = arith.constant 0 : index
    %12 = vector.load %arg3[%c0_5, %c0_6] : memref<2x512xf32, #tpu.memory_space<vmem>>, vector<2x512xf32>
    tpu.vector_store %arg3[%c0_5, %c0_6], %11 {strides = array<i32>} : memref<2x512xf32, #tpu.memory_space<vmem>>, vector<2x512xf32>,
    return
  }
}

</mosaic_0001>

<llo_original>
// kernel: tpu_custom_call.1
$region0: #{tpu_custom_call.1}
  #allocation0 [shape = 'u32[]', space=smem, size = 0x4, offset = 0x4, fixed_abs, tag = 'smem constant byte address 0x4 - core index']
  #allocation1 [shape = 'u32[72,128]{1,0:T(1,128)}', space=vmem, size = 0x9000, scoped, tag = 'internal scratch']
  #allocation2 [shape = 'f32[1,1]{1,0:T(1,128)S(6)}', space=smem, size = 0x200, scoped, tag = 'scoped memory for tpu_custom_call.1']
  %s0 = inlined_call_operand.<no memory space> [shape: f32[1,1], index: 0, kind: input, shape index: {}]
  %s1 = inlined_call_operand.hbm [shape: f32[2,512], index: 1, kind: input, shape index: {}]
  %s2 = inlined_call_operand.hbm [shape: f32[2,512], index: 2, kind: input, shape index: {}]
  %s3 = inlined_call_operand.hbm [shape: f32[2,512], index: 3, kind: output, shape index: {}]
  %s4 = sld [smem:[#allocation0]]
  $region30: #{tpu_custom_call.1} parent=0
    _
  %s6 = ssub.s32 1, %s4
  %s7 = scalar_select 0, %s6, %s4
  %8 = sst [smem:[#allocation2]] %s0
  $region1: #{tpu_custom_call.1} parent=0
    #allocation3 [shape = 'u8[4096]{0}', space=vmem, size = 0x1000, scoped, tag = 'input window, operand 1, single buffered']
    #allocation4 [shape = 's32[1]{0}', space=sflag, size = 0x4, scoped, tag = 'scoped memory for tpu_custom_call.1']
    #allocation5 [shape = 's32[1]{0}', space=sflag, size = 0x4, scoped, tag = 'scoped memory for tpu_custom_call.1']
    #allocation6 [shape = 'u8[4096]{0}', space=vmem, size = 0x1000, scoped, tag = 'input window, operand 2, single buffered']
    #allocation7 [shape = 's32[1]{0}', space=sflag, size = 0x4, scoped, tag = 'scoped memory for tpu_custom_call.1']
    #allocation8 [shape = 'u8[4096]{0}', space=vmem, size = 0x1000, scoped, tag = 'output window, operand 0, single buffered']
    %9 = vsyncpa [#allocation4], 0
    %10 = vsyncpa [#allocation7], 0
    %11 = vsyncpa [#allocation5], 0
    // Predicated region
    $region2: #{tpu_custom_call.1} parent=1 // pred_check
      _
    $region3: #{tpu_custom_call.1} parent=1 // pred_check_branch
      %13 = sbr.rel (0) target = $region5
    $region4: #{tpu_custom_call.1} parent=1 // pred_region
      _
    $region5: #{tpu_custom_call.1} parent=1 // pred_fallthru
      _
    // Predicated region
    $region6: #{tpu_custom_call.1} parent=1 // pred_check
      _
    $region7: #{tpu_custom_call.1} parent=1 // pred_check_branch
      %15 = sbr.rel (0) target = $region9
    $region8: #{tpu_custom_call.1} parent=1 // pred_region
      %17 = vsyncadd [#allocation4], 0
      %s19 = sshll.u32 %s1, 4
      %s20 = int_to_ptr.hbm [resolvable:$true] %s19
      %s21 = sshll.u32 [#allocation3], 4
      %s22 = int_to_ptr.vmem [resolvable:$true] %s21
      %24 = dma.hbm_to_vmem [thread:$0]  %s20, 128, %s22, [#allocation4]
    $region9: #{tpu_custom_call.1} parent=1 // pred_fallthru
      _
    // Predicated region
    $region10: #{tpu_custom_call.1} parent=1 // pred_check
      _
    $region11: #{tpu_custom_call.1} parent=1 // pred_check_branch
      %26 = sbr.rel (0) target = $region13
    $region12: #{tpu_custom_call.1} parent=1 // pred_region
      %28 = vsyncadd [#allocation7], 0
      %s30 = sshll.u32 %s2, 4
      %s31 = int_to_ptr.hbm [resolvable:$true] %s30
      %s32 = sshll.u32 [#allocation6], 4
      %s33 = int_to_ptr.vmem [resolvable:$true] %s32
      %35 = dma.hbm_to_vmem [thread:$0]  %s31, 128, %s33, [#allocation7]
    $region13: #{tpu_custom_call.1} parent=1 // pred_fallthru
      _
    // Predicated region
    $region14: #{tpu_custom_call.1} parent=1 // pred_check
      _
    $region15: #{tpu_custom_call.1} parent=1 // pred_check_branch
      %37 = sbr.rel (0) target = $region17
    $region16: #{tpu_custom_call.1} parent=1 // pred_region
      %39 = dma.done [#allocation4], 128
    $region17: #{tpu_custom_call.1} parent=1 // pred_fallthru
      _
    // Predicated region
    $region18: #{tpu_custom_call.1} parent=1 // pred_check
      _
    $region19: #{tpu_custom_call.1} parent=1 // pred_check_branch
      %41 = sbr.rel (0) target = $region21
    $region20: #{tpu_custom_call.1} parent=1 // pred_region
      %43 = dma.done [#allocation7], 128
    $region21: #{tpu_custom_call.1} parent=1 // pred_fallthru
      _
    %s44 = sld [smem:[#allocation2]]
    %v45 = vld [vmem:[#allocation3] sm:$0xff]
    %v46 = vld [vmem:[#allocation6] sm:$0xff]
    %v47 = vstv %s44
    %v48 = vmul.f32 %v47, %v46
    %v49 = vadd.f32 %v45, %v48
    %v50 = vmul.f32 %v49, %v49
    %52 = vst [vmem:[#allocation1] ss:$4 sm:$0xff] %v50
    %v53 = vld.sshfl [vmem:[#allocation1] sm:$0xff pattern:$0x73625140]
    %v54 = vld.sshfl [vmem:[#allocation1 + $0x8] sm:$0xff pattern:$0x73625140]
    %v55 = vld.sshfl [vmem:[#allocation1 + $0x10] sm:$0xff pattern:$0x73625140]
    %v56 = vld.sshfl [vmem:[#allocation1 + $0x18] sm:$0xff pattern:$0x73625140]
    %vm61 = vcmask 1041408
    %v62 = vsel %vm61, %v53, 0.0
    %v63 = vsel %vm61, %v54, 0.0
    %v64 = vadd.f32 %v62, %v63
    %v65 = vsel %vm61, %v55, 0.0
    %v66 = vadd.f32 %v64, %v65
    %v67 = vsel %vm61, %v56, 0.0
    %v68 = vadd.f32 %v66, %v67
    %69 = vadd.xlane.f32.xlu0 %v68
    %v70 = vpop.xlane.xlu0 %69
    %v71 = vrsqrt.pop %v70
    %v72 = vmul.f32 %v71, %v70
    %v73 = vmul.f32 %v72, %v71
    %v74 = vmul.f32 0.5, %v73
    %v75 = vsub.f32 1.5, %v74
    %v76 = vmul.f32 %v71, %v75
    %vm77 = vweird.f32 %v70
    %vm78 = vweird.f32 %v71
    %vm79 = vmor %vm77, %vm78
    %v80 = vsel %vm79, %v71, %v76
    %v83 = vunpack.c.l.s4 269488144
    %v84 = vunpack.c.0.s8 %v83
    %v85 = vperm.slane %v80, %v84
    %v87 = vmul.f32 %v49, %v85
    %88 = vst [vmem:[#allocation8] sm:$0xff] %v87
    // Predicated region
    $region22: #{tpu_custom_call.1} parent=1 // pred_check
      _
    $region23: #{tpu_custom_call.1} parent=1 // pred_check_branch
      %90 = sbr.rel (0) target = $region25
    $region24: #{tpu_custom_call.1} parent=1 // pred_region
      %92 = vsyncadd [#allocation5], 0
      %s94 = sshll.u32 [#allocation8], 4
      %s95 = int_to_ptr.vmem [resolvable:$true] %s94
      %s96 = sshll.u32 %s3, 4
      %s97 = int_to_ptr.hbm [resolvable:$true] %s96
      %99 = dma.vmem_to_hbm [thread:$0]  %s95, 128, %s97, [#allocation5]
    $region25: #{tpu_custom_call.1} parent=1 // pred_fallthru
      _
    // Predicated region
    $region26: #{tpu_custom_call.1} parent=1 // pred_check
      _
    $region27: #{tpu_custom_call.1} parent=1 // pred_check_branch
      %101 = sbr.rel (0) target = $region29
    $region28: #{tpu_custom_call.1} parent=1 // pred_region
      %103 = dma.done [#allocation5], 128
    $region29: #{tpu_custom_call.1} parent=1 // pred_fallthru
      _
    %104 = vsyncpa [#allocation4], 1
    %105 = vsyncpa [#allocation7], 1
    %106 = vsyncpa [#allocation5], 1

</llo_original>
